<compile_context>
chip_gen: v7x
topology: tpu7x:2x2x1
jax: 0.10.0
libtpu: 0.0.40
codegen_flags: <defaults>
</compile_context>

<pallas_src>
import jax
import jax.numpy as jnp
from jax.experimental import pallas as pl
from jax.experimental.pallas import tpu as pltpu


def lstm_classifier_kernel(xg_ref, whh_ref, w1_ref, b1_ref, w2_ref, b2_ref,
                           out_ref):
    # xg_ref: (T, Bblk, 4H) precomputed x_t @ W_ih + (b_ih + b_hh), time-major
    # whh_ref: (H, 4H) fused recurrent weights (possibly bf16)
    T, _, _ = xg_ref.shape
    H = whh_ref.shape[0]

    w_hh = whh_ref[...]          # hoisted out of the loop
    w1 = w1_ref[...]
    b1 = b1_ref[...]
    w2 = w2_ref[...]
    b2 = b2_ref[...]

    def gates(g):
        # torch nn.LSTM gate order: [i, f, g, o]
        i = jax.nn.sigmoid(g[:, 0:H])
        f = jax.nn.sigmoid(g[:, H:2 * H])
        gg = jnp.tanh(g[:, 2 * H:3 * H])
        o = jax.nn.sigmoid(g[:, 3 * H:4 * H])
        return i, f, gg, o

    # --- t = 0 peeled: h0 = c0 = 0, so the h @ W_hh term is exactly zero. ---
    i0, f0, g0, o0 = gates(xg_ref[0])
    c = i0 * g0
    h = o0 * jnp.tanh(c)
    pooled = h                                       # max-pool seed (no -inf needed)

    def step(t, carry):
        h, c, pooled = carry
        # Single fused recurrent matmul per step; f32 accumulation on the MXU.
        g = xg_ref[t] + jnp.dot(h.astype(w_hh.dtype), w_hh,
                                preferred_element_type=jnp.float32)
        i, f, gg, o = gates(g)
        c = f * c + i * gg
        h = o * jnp.tanh(c)
        pooled = jnp.maximum(pooled, h)              # global max pool over time
        return h, c, pooled

    h, c, pooled = jax.lax.fori_loop(1, T, step, (h, c, pooled), unroll=True)

    # fc1 -> relu -> fc2 -> softmax(dim=1); dropouts are identity in eval.
    hidden = jnp.maximum(
        jnp.dot(pooled, w1, preferred_element_type=jnp.float32) + b1, 0.0)
    logits = jnp.dot(hidden, w2, preferred_element_type=jnp.float32) + b2
    logits = logits - jnp.max(logits, axis=1, keepdims=True)
    e = jnp.exp(logits)
    out_ref[...] = (e / jnp.sum(e, axis=1, keepdims=True)).astype(out_ref.dtype)


def lstm_classifier_forward(input_ids, params, matmul_dtype=jnp.float32):
    # Embedding lookup is glue (data-dependent gather) in plain JAX/XLA.
    emb = jnp.take(params["embedding"], input_ids, axis=0)        # (B, T, E)
    B, T, E = emb.shape
    H = params["w_hh"].shape[0]
    F1 = params["w1"].shape[1]
    C = params["b2"].shape[-1]

    # Whole-sequence input projection in XLA: one (B*T, E) x (E, 4H) matmul with
    # the combined bias folded in. Gate order [i, f, g, o].
    bias = (params["b_ih"] + params["b_hh"]).astype(jnp.float32)   # (1, 4H)
    xg = jnp.dot(emb.reshape(B * T, E).astype(matmul_dtype),
                 params["w_ih"].astype(matmul_dtype),
                 preferred_element_type=jnp.float32) + bias
    xg = xg.reshape(B, T, 4 * H).transpose(1, 0, 2)                # (T, B, 4H)

    w_hh = params["w_hh"].astype(matmul_dtype)                     # (H, 4H)

    block_b = B if B <= 8 else 8
    grid = (pl.cdiv(B, block_b),)

    cost = pl.CostEstimate(
        flops=2 * T * B * H * 4 * H + 2 * B * (H * F1 + F1 * C),
        transcendentals=5 * T * B * H,
        bytes_accessed=int(T * B * 4 * H * 4
                           + H * 4 * H * w_hh.dtype.itemsize
                           + H * F1 * 4 + F1 * C * 4 + B * C * 4),
    )

    return pl.pallas_call(
        lstm_classifier_kernel,
        out_shape=jax.ShapeDtypeStruct((B, C), jnp.float32),
        grid=grid,
        in_specs=[
            pl.BlockSpec((T, block_b, 4 * H), lambda b: (0, b, 0)),
            pl.BlockSpec((H, 4 * H), lambda b: (0, 0)),
            pl.BlockSpec((H, F1), lambda b: (0, 0)),
            pl.BlockSpec((1, F1), lambda b: (0, 0)),
            pl.BlockSpec((F1, C), lambda b: (0, 0)),
            pl.BlockSpec((1, C), lambda b: (0, 0)),
        ],
        out_specs=pl.BlockSpec((block_b, C), lambda b: (b, 0)),
        compiler_params=pltpu.CompilerParams(
            dimension_semantics=("parallel",)),
        cost_estimate=cost,
    )(xg, w_hh, params["w1"], params["b1"], params["w2"], params["b2"])


def init_params(key, vocab_size, embed_dim, hidden_dim, num_classes, fc1_dim=64):
    ks = jax.random.split(key, 9)
    k_lstm = 1.0 / jnp.sqrt(hidden_dim)
    k_fc1 = 1.0 / jnp.sqrt(hidden_dim)
    k_fc2 = 1.0 / jnp.sqrt(fc1_dim)
    u = lambda k, shape, a: jax.random.uniform(k, shape, jnp.float32, -a, a)
    return {
        "embedding": jax.random.normal(ks[0], (vocab_size, embed_dim), jnp.float32),
        # torch nn.LSTM layout, gate order [i, f, g, o], stored transposed & fused.
        "w_ih": u(ks[1], (embed_dim, 4 * hidden_dim), k_lstm),
        "w_hh": u(ks[2], (hidden_dim, 4 * hidden_dim), k_lstm),
        "b_ih": u(ks[3], (1, 4 * hidden_dim), k_lstm),
        "b_hh": u(ks[4], (1, 4 * hidden_dim), k_lstm),
        "w1": u(ks[5], (hidden_dim, fc1_dim), k_fc1),
        "b1": u(ks[6], (1, fc1_dim), k_fc1),
        "w2": u(ks[7], (fc1_dim, num_classes), k_fc2),
        "b2": u(ks[8], (1, num_classes), k_fc2),
    }


def reference_forward(input_ids, params):
    """Pure-JAX f32 reference mirroring torch LSTMClassifier semantics."""
    emb = jnp.take(params["embedding"], input_ids, axis=0)          # (B, T, E)
    B, T, _ = emb.shape
    H = params["w_hh"].shape[0]
    w_ih, w_hh = params["w_ih"], params["w_hh"]
    b = params["b_ih"] + params["b_hh"]

    def step(carry, x_t):
        h, c = carry
        g = x_t @ w_ih + h @ w_hh + b
        i = jax.nn.sigmoid(g[:, 0:H])
        f = jax.nn.sigmoid(g[:, H:2 * H])
        gg = jnp.tanh(g[:, 2 * H:3 * H])
        o = jax.nn.sigmoid(g[:, 3 * H:4 * H])
        c = f * c + i * gg
        h = o * jnp.tanh(c)
        return (h, c), h

    h0 = jnp.zeros((B, H), jnp.float32)
    (_, _), hs = jax.lax.scan(step, (h0, h0), jnp.transpose(emb, (1, 0, 2)))
    pooled = jnp.max(hs, axis=0)                                    # (B, H)
    hidden = jax.nn.relu(pooled @ params["w1"] + params["b1"])
    logits = hidden @ params["w2"] + params["b2"]
    return jax.nn.softmax(logits, axis=1)


if __name__ == "__main__":
    VOCAB, EMBED, HIDDEN, CLASSES = 50, 16, 32, 4
    B, T = 2, 8

    key = jax.random.PRNGKey(0)
    k_ids, k_params = jax.random.split(key)
    input_ids = jax.random.randint(k_ids, (B, T), 0, VOCAB, dtype=jnp.int32)
    params = init_params(k_params, VOCAB, EMBED, HIDDEN, CLASSES)

    ref = jax.block_until_ready(reference_forward(input_ids, params))

    # f32 path: exact match against the reference.
    out = jax.block_until_ready(lstm_classifier_forward(input_ids, params))
    assert out.shape == (B, CLASSES)
    assert jnp.allclose(jnp.sum(out, axis=1), 1.0, atol=1e-5)
    assert jnp.allclose(out, ref, atol=1e-3, rtol=1e-3)

    # bf16 MXU inputs (recommended on v6e/v7x); elementwise gate math stays f32.
    out_bf16 = jax.block_until_ready(
        lstm_classifier_forward(input_ids, params, matmul_dtype=jnp.bfloat16))
    assert bool(jnp.all(jnp.isfinite(out_bf16)))
    assert jnp.allclose(out_bf16, ref, atol=5e-2)

    print("KERNEL_OK")
</pallas_src>

<mosaic_0001>
module attributes {stable_mosaic.version = 11 : i64} {
  func.func @lstm_classifier_kernel(%arg0: i32, %arg1: memref<8x2x128xf32, #tpu.memory_space<vmem>>, %arg2: memref<32x128xf32, #tpu.memory_space<vmem>>, %arg3: memref<32x64xf32, #tpu.memory_space<vmem>>, %arg4: memref<1x64xf32, #tpu.memory_space<vmem>>, %arg5: memref<64x4xf32, #tpu.memory_space<vmem>>, %arg6: memref<1x4xf32, #tpu.memory_space<vmem>>, %arg7: memref<2x4xf32, #tpu.memory_space<vmem>>) attributes {dimension_semantics = [#tpu.dimension_semantics<parallel>], iteration_bounds = array<i64: 1>, scalar_prefetch = 0 : i64, scratch_operands = 0 : i64, tpu.core_type = #tpu.core_type<tc>, window_params = [{transform_indices = @transform_0, window_bounds = array<i64: 8, 2, 128>}, {pipeline_mode = #tpu.pipeline_mode<synchronous>, transform_indices = @transform_1, window_bounds = array<i64: 32, 128>}, {pipeline_mode = #tpu.pipeline_mode<synchronous>, transform_indices = @transform_2, window_bounds = array<i64: 32, 64>}, {pipeline_mode = #tpu.pipeline_mode<synchronous>, transform_indices = @transform_3, window_bounds = array<i64: 1, 64>}, {pipeline_mode = #tpu.pipeline_mode<synchronous>, transform_indices = @transform_4, window_bounds = array<i64: 64, 4>}, {pipeline_mode = #tpu.pipeline_mode<synchronous>, transform_indices = @transform_5, window_bounds = array<i64: 1, 4>}, {transform_indices = @transform_6, window_bounds = array<i64: 2, 4>}]} {
    %c0 = arith.constant 0 : index
    %c0_0 = arith.constant 0 : index
    %0 = vector.load %arg2[%c0, %c0_0] : memref<32x128xf32, #tpu.memory_space<vmem>>, vector<32x128xf32>
    %c0_1 = arith.constant 0 : index
    %c0_2 = arith.constant 0 : index
    %1 = vector.load %arg3[%c0_1, %c0_2] : memref<32x64xf32, #tpu.memory_space<vmem>>, vector<32x64xf32>
    %c0_3 = arith.constant 0 : index
    %c0_4 = arith.constant 0 : index
    %2 = vector.load %arg4[%c0_3, %c0_4] : memref<1x64xf32, #tpu.memory_space<vmem>>, vector<1x64xf32>
    %c0_5 = arith.constant 0 : index
    %c0_6 = arith.constant 0 : index
    %3 = vector.load %arg5[%c0_5, %c0_6] : memref<64x4xf32, #tpu.memory_space<vmem>>, vector<64x4xf32>
    %c0_7 = arith.constant 0 : index
    %c0_8 = arith.constant 0 : index
    %4 = vector.load %arg6[%c0_7, %c0_8] : memref<1x4xf32, #tpu.memory_space<vmem>>, vector<1x4xf32>
    %c0_9 = arith.constant 0 : index
    %c0_10 = arith.constant 0 : index
    %c0_11 = arith.constant 0 : index
    %5 = vector.load %arg1[%c0_9, %c0_10, %c0_11] : memref<8x2x128xf32, #tpu.memory_space<vmem>>, vector<1x2x128xf32>
    %6 = vector.shape_cast %5 : vector<1x2x128xf32> to vector<2x128xf32>
    %7 = vector.extract_strided_slice %6 {offsets = [0, 0], sizes = [2, 32], strides = [1, 1]} : vector<2x128xf32> to vector<2x32xf32>
    %8 = arith.negf %7 : vector<2x32xf32>
    %9 = math.exp %8 : vector<2x32xf32>
    %cst = arith.constant 1.000000e+00 : f32
    %10 = vector.broadcast %cst : f32 to vector<2x32xf32>
    %11 = arith.addf %10, %9 : vector<2x32xf32>
    %12 = arith.divf %10, %11 : vector<2x32xf32>
    %13 = vector.extract_strided_slice %6 {offsets = [0, 64], sizes = [2, 32], strides = [1, 1]} : vector<2x128xf32> to vector<2x32xf32>
    %14 = math.tanh %13 : vector<2x32xf32>
    %15 = vector.extract_strided_slice %6 {offsets = [0, 96], sizes = [2, 32], strides = [1, 1]} : vector<2x128xf32> to vector<2x32xf32>
    %16 = arith.negf %15 : vector<2x32xf32>
    %17 = math.exp %16 : vector<2x32xf32>
    %cst_12 = arith.constant 1.000000e+00 : f32
    %18 = vector.broadcast %cst_12 : f32 to vector<2x32xf32>
    %19 = arith.addf %18, %17 : vector<2x32xf32>
    %20 = arith.divf %18, %19 : vector<2x32xf32>
    %21 = arith.mulf %12, %14 : vector<2x32xf32>
    %22 = math.tanh %21 : vector<2x32xf32>
    %23 = arith.mulf %20, %22 : vector<2x32xf32>
    %c1_i32 = arith.constant 1 : i32
    %24 = arith.index_cast %c1_i32 : i32 to index
    %c0_13 = arith.constant 0 : index
    %c0_14 = arith.constant 0 : index
    %25 = vector.load %arg1[%24, %c0_13, %c0_14] : memref<8x2x128xf32, #tpu.memory_space<vmem>>, vector<1x2x128xf32>
    %26 = vector.shape_cast %25 : vector<1x2x128xf32> to vector<2x128xf32>
    %cst_15 = arith.constant dense<0.000000e+00> : vector<2x128xf32>
    %27 = tpu.matmul %23, %0, %cst_15 {dimension_numbers = #tpu.dot_dimension_numbers<[1], [0], [0], [1], [0, 0, 1, 1], [], []>} : vector<2x32xf32>, vector<32x128xf32>, vector<2x128xf32> -> vector<2x128xf32>
    %28 = arith.addf %26, %27 : vector<2x128xf32>
    %29 = vector.extract_strided_slice %28 {offsets = [0, 0], sizes = [2, 32], strides = [1, 1]} : vector<2x128xf32> to vector<2x32xf32>
    %30 = arith.negf %29 : vector<2x32xf32>
    %31 = math.exp %30 : vector<2x32xf32>
    %cst_16 = arith.constant 1.000000e+00 : f32
    %32 = vector.broadcast %cst_16 : f32 to vector<2x32xf32>
    %33 = arith.addf %32, %31 : vector<2x32xf32>
    %34 = arith.divf %32, %33 : vector<2x32xf32>
    %35 = vector.extract_strided_slice %28 {offsets = [0, 32], sizes = [2, 32], strides = [1, 1]} : vector<2x128xf32> to vector<2x32xf32>
    %36 = arith.negf %35 : vector<2x32xf32>
    %37 = math.exp %36 : vector<2x32xf32>
    %cst_17 = arith.constant 1.000000e+00 : f32
    %38 = vector.broadcast %cst_17 : f32 to vector<2x32xf32>
    %39 = arith.addf %38, %37 : vector<2x32xf32>
    %40 = arith.divf %38, %39 : vector<2x32xf32>
    %41 = vector.extract_strided_slice %28 {offsets = [0, 64], sizes = [2, 32], strides = [1, 1]} : vector<2x128xf32> to vector<2x32xf32>
    %42 = math.tanh %41 : vector<2x32xf32>
    %43 = vector.extract_strided_slice %28 {offsets = [0, 96], sizes = [2, 32], strides = [1, 1]} : vector<2x128xf32> to vector<2x32xf32>
    %44 = arith.negf %43 : vector<2x32xf32>
    %45 = math.exp %44 : vector<2x32xf32>
    %cst_18 = arith.constant 1.000000e+00 : f32
    %46 = vector.broadcast %cst_18 : f32 to vector<2x32xf32>
    %47 = arith.addf %46, %45 : vector<2x32xf32>
    %48 = arith.divf %46, %47 : vector<2x32xf32>
    %49 = arith.mulf %40, %21 : vector<2x32xf32>
    %50 = arith.mulf %34, %42 : vector<2x32xf32>
    %51 = arith.addf %49, %50 : vector<2x32xf32>
    %52 = math.tanh %51 : vector<2x32xf32>
    %53 = arith.mulf %48, %52 : vector<2x32xf32>
    %54 = arith.maximumf %23, %53 : vector<2x32xf32>
    %c2_i32 = arith.constant 2 : i32
    %55 = arith.index_cast %c2_i32 : i32 to index
    %c0_19 = arith.constant 0 : index
    %c0_20 = arith.constant 0 : index
    %56 = vector.load %arg1[%55, %c0_19, %c0_20] : memref<8x2x128xf32, #tpu.memory_space<vmem>>, vector<1x2x128xf32>
    %57 = vector.shape_cast %56 : vector<1x2x128xf32> to vector<2x128xf32>
    %cst_21 = arith.constant dense<0.000000e+00> : vector<2x128xf32>
    %58 = tpu.matmul %53, %0, %cst_21 {dimension_numbers = #tpu.dot_dimension_numbers<[1], [0], [0], [1], [0, 0, 1, 1], [], []>} : vector<2x32xf32>, vector<32x128xf32>, vector<2x128xf32> -> vector<2x128xf32>
    %59 = arith.addf %57, %58 : vector<2x128xf32>
    %60 = vector.extract_strided_slice %59 {offsets = [0, 0], sizes = [2, 32], strides = [1, 1]} : vector<2x128xf32> to vector<2x32xf32>
    %61 = arith.negf %60 : vector<2x32xf32>
    %62 = math.exp %61 : vector<2x32xf32>
    %cst_22 = arith.constant 1.000000e+00 : f32
    %63 = vector.broadcast %cst_22 : f32 to vector<2x32xf32>
    %64 = arith.addf %63, %62 : vector<2x32xf32>
    %65 = arith.divf %63, %64 : vector<2x32xf32>
    %66 = vector.extract_strided_slice %59 {offsets = [0, 32], sizes = [2, 32], strides = [1, 1]} : vector<2x128xf32> to vector<2x32xf32>
    %67 = arith.negf %66 : vector<2x32xf32>
    %68 = math.exp %67 : vector<2x32xf32>
    %cst_23 = arith.constant 1.000000e+00 : f32
    %69 = vector.broadcast %cst_23 : f32 to vector<2x32xf32>
    %70 = arith.addf %69, %68 : vector<2x32xf32>
    %71 = arith.divf %69, %70 : vector<2x32xf32>
    %72 = vector.extract_strided_slice %59 {offsets = [0, 64], sizes = [2, 32], strides = [1, 1]} : vector<2x128xf32> to vector<2x32xf32>
    %73 = math.tanh %72 : vector<2x32xf32>
    %74 = vector.extract_strided_slice %59 {offsets = [0, 96], sizes = [2, 32], strides = [1, 1]} : vector<2x128xf32> to vector<2x32xf32>
    %75 = arith.negf %74 : vector<2x32xf32>
    %76 = math.exp %75 : vector<2x32xf32>
    %cst_24 = arith.constant 1.000000e+00 : f32
    %77 = vector.broadcast %cst_24 : f32 to vector<2x32xf32>
    %78 = arith.addf %77, %76 : vector<2x32xf32>
    %79 = arith.divf %77, %78 : vector<2x32xf32>
    %80 = arith.mulf %71, %51 : vector<2x32xf32>
    %81 = arith.mulf %65, %73 : vector<2x32xf32>
    %82 = arith.addf %80, %81 : vector<2x32xf32>
    %83 = math.tanh %82 : vector<2x32xf32>
    %84 = arith.mulf %79, %83 : vector<2x32xf32>
    %85 = arith.maximumf %54, %84 : vector<2x32xf32>
    %c3_i32 = arith.constant 3 : i32
    %86 = arith.index_cast %c3_i32 : i32 to index
    %c0_25 = arith.constant 0 : index
    %c0_26 = arith.constant 0 : index
    %87 = vector.load %arg1[%86, %c0_25, %c0_26] : memref<8x2x128xf32, #tpu.memory_space<vmem>>, vector<1x2x128xf32>
    %88 = vector.shape_cast %87 : vector<1x2x128xf32> to vector<2x128xf32>
    %cst_27 = arith.constant dense<0.000000e+00> : vector<2x128xf32>
    %89 = tpu.matmul %84, %0, %cst_27 {dimension_numbers = #tpu.dot_dimension_numbers<[1], [0], [0], [1], [0, 0, 1, 1], [], []>} : vector<2x32xf32>, vector<32x128xf32>, vector<2x128xf32> -> vector<2x128xf32>
    %90 = arith.addf %88, %89 : vector<2x128xf32>
    %91 = vector.extract_strided_slice %90 {offsets = [0, 0], sizes = [2, 32], strides = [1, 1]} : vector<2x128xf32> to vector<2x32xf32>
    %92 = arith.negf %91 : vector<2x32xf32>
    %93 = math.exp %92 : vector<2x32xf32>
    %cst_28 = arith.constant 1.000000e+00 : f32
    %94 = vector.broadcast %cst_28 : f32 to vector<2x32xf32>
    %95 = arith.addf %94, %93 : vector<2x32xf32>
    %96 = arith.divf %94, %95 : vector<2x32xf32>
    %97 = vector.extract_strided_slice %90 {offsets = [0, 32], sizes = [2, 32], strides = [1, 1]} : vector<2x128xf32> to vector<2x32xf32>
    %98 = arith.negf %97 : vector<2x32xf32>
    %99 = math.exp %98 : vector<2x32xf32>
    %cst_29 = arith.constant 1.000000e+00 : f32
    %100 = vector.broadcast %cst_29 : f32 to vector<2x32xf32>
    %101 = arith.addf %100, %99 : vector<2x32xf32>
    %102 = arith.divf %100, %101 : vector<2x32xf32>
    %103 = vector.extract_strided_slice %90 {offsets = [0, 64], sizes = [2, 32], strides = [1, 1]} : vector<2x128xf32> to vector<2x32xf32>
    %104 = math.tanh %103 : vector<2x32xf32>
    %105 = vector.extract_strided_slice %90 {offsets = [0, 96], sizes = [2, 32], strides = [1, 1]} : vector<2x128xf32> to vector<2x32xf32>
    %106 = arith.negf %105 : vector<2x32xf32>
    %107 = math.exp %106 : vector<2x32xf32>
    %cst_30 = arith.constant 1.000000e+00 : f32
    %108 = vector.broadcast %cst_30 : f32 to vector<2x32xf32>
    %109 = arith.addf %108, %107 : vector<2x32xf32>
    %110 = arith.divf %108, %109 : vector<2x32xf32>
    %111 = arith.mulf %102, %82 : vector<2x32xf32>
    %112 = arith.mulf %96, %104 : vector<2x32xf32>
    %113 = arith.addf %111, %112 : vector<2x32xf32>
    %114 = math.tanh %113 : vector<2x32xf32>
    %115 = arith.mulf %110, %114 : vector<2x32xf32>
    %116 = arith.maximumf %85, %115 : vector<2x32xf32>
    %c4_i32 = arith.constant 4 : i32
    %117 = arith.index_cast %c4_i32 : i32 to index
    %c0_31 = arith.constant 0 : index
    %c0_32 = arith.constant 0 : index
    %118 = vector.load %arg1[%117, %c0_31, %c0_32] : memref<8x2x128xf32, #tpu.memory_space<vmem>>, vector<1x2x128xf32>
    %119 = vector.shape_cast %118 : vector<1x2x128xf32> to vector<2x128xf32>
    %cst_33 = arith.constant dense<0.000000e+00> : vector<2x128xf32>
    %120 = tpu.matmul %115, %0, %cst_33 {dimension_numbers = #tpu.dot_dimension_numbers<[1], [0], [0], [1], [0, 0, 1, 1], [], []>} : vector<2x32xf32>, vector<32x128xf32>, vector<2x128xf32> -> vector<2x128xf32>
    %121 = arith.addf %119, %120 : vector<2x128xf32>
    %122 = vector.extract_strided_slice %121 {offsets = [0, 0], sizes = [2, 32], strides = [1, 1]} : vector<2x128xf32> to vector<2x32xf32>
    %123 = arith.negf %122 : vector<2x32xf32>
    %124 = math.exp %123 : vector<2x32xf32>
    %cst_34 = arith.constant 1.000000e+00 : f32
    %125 = vector.broadcast %cst_34 : f32 to vector<2x32xf32>
    %126 = arith.addf %125, %124 : vector<2x32xf32>
    %127 = arith.divf %125, %126 : vector<2x32xf32>
    %128 = vector.extract_strided_slice %121 {offsets = [0, 32], sizes = [2, 32], strides = [1, 1]} : vector<2x128xf32> to vector<2x32xf32>
    %129 = arith.negf %128 : vector<2x32xf32>
    %130 = math.exp %129 : vector<2x32xf32>
    %cst_35 = arith.constant 1.000000e+00 : f32
    %131 = vector.broadcast %cst_35 : f32 to vector<2x32xf32>
    %132 = arith.addf %131, %130 : vector<2x32xf32>
    %133 = arith.divf %131, %132 : vector<2x32xf32>
    %134 = vector.extract_strided_slice %121 {offsets = [0, 64], sizes = [2, 32], strides = [1, 1]} : vector<2x128xf32> to vector<2x32xf32>
    %135 = math.tanh %134 : vector<2x32xf32>
    %136 = vector.extract_strided_slice %121 {offsets = [0, 96], sizes = [2, 32], strides = [1, 1]} : vector<2x128xf32> to vector<2x32xf32>
    %137 = arith.negf %136 : vector<2x32xf32>
    %138 = math.exp %137 : vector<2x32xf32>
    %cst_36 = arith.constant 1.000000e+00 : f32
    %139 = vector.broadcast %cst_36 : f32 to vector<2x32xf32>
    %140 = arith.addf %139, %138 : vector<2x32xf32>
    %141 = arith.divf %139, %140 : vector<2x32xf32>
    %142 = arith.mulf %133, %113 : vector<2x32xf32>
    %143 = arith.mulf %127, %135 : vector<2x32xf32>
    %144 = arith.addf %142, %143 : vector<2x32xf32>
    %145 = math.tanh %144 : vector<2x32xf32>
    %146 = arith.mulf %141, %145 : vector<2x32xf32>
    %147 = arith.maximumf %116, %146 : vector<2x32xf32>
    %c5_i32 = arith.constant 5 : i32
    %148 = arith.index_cast %c5_i32 : i32 to index
    %c0_37 = arith.constant 0 : index
    %c0_38 = arith.constant 0 : index
    %149 = vector.load %arg1[%148, %c0_37, %c0_38] : memref<8x2x128xf32, #tpu.memory_space<vmem>>, vector<1x2x128xf32>
    %150 = vector.shape_cast %149 : vector<1x2x128xf32> to vector<2x128xf32>
    %cst_39 = arith.constant dense<0.000000e+00> : vector<2x128xf32>
    %151 = tpu.matmul %146, %0, %cst_39 {dimension_numbers = #tpu.dot_dimension_numbers<[1], [0], [0], [1], [0, 0, 1, 1], [], []>} : vector<2x32xf32>, vector<32x128xf32>, vector<2x128xf32> -> vector<2x128xf32>
    %152 = arith.addf %150, %151 : vector<2x128xf32>
    %153 = vector.extract_strided_slice %152 {offsets = [0, 0], sizes = [2, 32], strides = [1, 1]} : vector<2x128xf32> to vector<2x32xf32>
    %154 = arith.negf %153 : vector<2x32xf32>
    %155 = math.exp %154 : vector<2x32xf32>
    %cst_40 = arith.constant 1.000000e+00 : f32
    %156 = vector.broadcast %cst_40 : f32 to vector<2x32xf32>
    %157 = arith.addf %156, %155 : vector<2x32xf32>
    %158 = arith.divf %156, %157 : vector<2x32xf32>
    %159 = vector.extract_strided_slice %152 {offsets = [0, 32], sizes = [2, 32], strides = [1, 1]} : vector<2x128xf32> to vector<2x32xf32>
    %160 = arith.negf %159 : vector<2x32xf32>
    %161 = math.exp %160 : vector<2x32xf32>
    %cst_41 = arith.constant 1.000000e+00 : f32
    %162 = vector.broadcast %cst_41 : f32 to vector<2x32xf32>
    %163 = arith.addf %162, %161 : vector<2x32xf32>
    %164 = arith.divf %162, %163 : vector<2x32xf32>
    %165 = vector.extract_strided_slice %152 {offsets = [0, 64], sizes = [2, 32], strides = [1, 1]} : vector<2x128xf32> to vector<2x32xf32>
    %166 = math.tanh %165 : vector<2x32xf32>
    %167 = vector.extract_strided_slice %152 {offsets = [0, 96], sizes = [2, 32], strides = [1, 1]} : vector<2x128xf32> to vector<2x32xf32>
    %168 = arith.negf %167 : vector<2x32xf32>
    %169 = math.exp %168 : vector<2x32xf32>
    %cst_42 = arith.constant 1.000000e+00 : f32
    %170 = vector.broadcast %cst_42 : f32 to vector<2x32xf32>
    %171 = arith.addf %170, %169 : vector<2x32xf32>
    %172 = arith.divf %170, %171 : vector<2x32xf32>
    %173 = arith.mulf %164, %144 : vector<2x32xf32>
    %174 = arith.mulf %158, %166 : vector<2x32xf32>
    %175 = arith.addf %173, %174 : vector<2x32xf32>
    %176 = math.tanh %175 : vector<2x32xf32>
    %177 = arith.mulf %172, %176 : vector<2x32xf32>
    %178 = arith.maximumf %147, %177 : vector<2x32xf32>
    %c6_i32 = arith.constant 6 : i32
    %179 = arith.index_cast %c6_i32 : i32 to index
    %c0_43 = arith.constant 0 : index
    %c0_44 = arith.constant 0 : index
    %180 = vector.load %arg1[%179, %c0_43, %c0_44] : memref<8x2x128xf32, #tpu.memory_space<vmem>>, vector<1x2x128xf32>
    %181 = vector.shape_cast %180 : vector<1x2x128xf32> to vector<2x128xf32>
    %cst_45 = arith.constant dense<0.000000e+00> : vector<2x128xf32>
    %182 = tpu.matmul %177, %0, %cst_45 {dimension_numbers = #tpu.dot_dimension_numbers<[1], [0], [0], [1], [0, 0, 1, 1], [], []>} : vector<2x32xf32>, vector<32x128xf32>, vector<2x128xf32> -> vector<2x128xf32>
    %183 = arith.addf %181, %182 : vector<2x128xf32>
    %184 = vector.extract_strided_slice %183 {offsets = [0, 0], sizes = [2, 32], strides = [1, 1]} : vector<2x128xf32> to vector<2x32xf32>
    %185 = arith.negf %184 : vector<2x32xf32>
    %186 = math.exp %185 : vector<2x32xf32>
    %cst_46 = arith.constant 1.000000e+00 : f32
    %187 = vector.broadcast %cst_46 : f32 to vector<2x32xf32>
    %188 = arith.addf %187, %186 : vector<2x32xf32>
    %189 = arith.divf %187, %188 : vector<2x32xf32>
    %190 = vector.extract_strided_slice %183 {offsets = [0, 32], sizes = [2, 32], strides = [1, 1]} : vector<2x128xf32> to vector<2x32xf32>
    %191 = arith.negf %190 : vector<2x32xf32>
    %192 = math.exp %191 : vector<2x32xf32>
    %cst_47 = arith.constant 1.000000e+00 : f32
    %193 = vector.broadcast %cst_47 : f32 to vector<2x32xf32>
    %194 = arith.addf %193, %192 : vector<2x32xf32>
    %195 = arith.divf %193, %194 : vector<2x32xf32>
    %196 = vector.extract_strided_slice %183 {offsets = [0, 64], sizes = [2, 32], strides = [1, 1]} : vector<2x128xf32> to vector<2x32xf32>
    %197 = math.tanh %196 : vector<2x32xf32>
    %198 = vector.extract_strided_slice %183 {offsets = [0, 96], sizes = [2, 32], strides = [1, 1]} : vector<2x128xf32> to vector<2x32xf32>
    %199 = arith.negf %198 : vector<2x32xf32>
    %200 = math.exp %199 : vector<2x32xf32>
    %cst_48 = arith.constant 1.000000e+00 : f32
    %201 = vector.broadcast %cst_48 : f32 to vector<2x32xf32>
    %202 = arith.addf %201, %200 : vector<2x32xf32>
    %203 = arith.divf %201, %202 : vector<2x32xf32>
    %204 = arith.mulf %195, %175 : vector<2x32xf32>
    %205 = arith.mulf %189, %197 : vector<2x32xf32>
    %206 = arith.addf %204, %205 : vector<2x32xf32>
    %207 = math.tanh %206 : vector<2x32xf32>
    %208 = arith.mulf %203, %207 : vector<2x32xf32>
    %209 = arith.maximumf %178, %208 : vector<2x32xf32>
    %c7_i32 = arith.constant 7 : i32
    %210 = arith.index_cast %c7_i32 : i32 to index
    %c0_49 = arith.constant 0 : index
    %c0_50 = arith.constant 0 : index
    %211 = vector.load %arg1[%210, %c0_49, %c0_50] : memref<8x2x128xf32, #tpu.memory_space<vmem>>, vector<1x2x128xf32>
    %212 = vector.shape_cast %211 : vector<1x2x128xf32> to vector<2x128xf32>
    %cst_51 = arith.constant dense<0.000000e+00> : vector<2x128xf32>
    %213 = tpu.matmul %208, %0, %cst_51 {dimension_numbers = #tpu.dot_dimension_numbers<[1], [0], [0], [1], [0, 0, 1, 1], [], []>} : vector<2x32xf32>, vector<32x128xf32>, vector<2x128xf32> -> vector<2x128xf32>
    %214 = arith.addf %212, %213 : vector<2x128xf32>
    %215 = vector.extract_strided_slice %214 {offsets = [0, 0], sizes = [2, 32], strides = [1, 1]} : vector<2x128xf32> to vector<2x32xf32>
    %216 = arith.negf %215 : vector<2x32xf32>
    %217 = math.exp %216 : vector<2x32xf32>
    %cst_52 = arith.constant 1.000000e+00 : f32
    %218 = vector.broadcast %cst_52 : f32 to vector<2x32xf32>
    %219 = arith.addf %218, %217 : vector<2x32xf32>
    %220 = arith.divf %218, %219 : vector<2x32xf32>
    %221 = vector.extract_strided_slice %214 {offsets = [0, 32], sizes = [2, 32], strides = [1, 1]} : vector<2x128xf32> to vector<2x32xf32>
    %222 = arith.negf %221 : vector<2x32xf32>
    %223 = math.exp %222 : vector<2x32xf32>
    %cst_53 = arith.constant 1.000000e+00 : f32
    %224 = vector.broadcast %cst_53 : f32 to vector<2x32xf32>
    %225 = arith.addf %224, %223 : vector<2x32xf32>
    %226 = arith.divf %224, %225 : vector<2x32xf32>
    %227 = vector.extract_strided_slice %214 {offsets = [0, 64], sizes = [2, 32], strides = [1, 1]} : vector<2x128xf32> to vector<2x32xf32>
    %228 = math.tanh %227 : vector<2x32xf32>
    %229 = vector.extract_strided_slice %214 {offsets = [0, 96], sizes = [2, 32], strides = [1, 1]} : vector<2x128xf32> to vector<2x32xf32>
    %230 = arith.negf %229 : vector<2x32xf32>
    %231 = math.exp %230 : vector<2x32xf32>
    %cst_54 = arith.constant 1.000000e+00 : f32
    %232 = vector.broadcast %cst_54 : f32 to vector<2x32xf32>
    %233 = arith.addf %232, %231 : vector<2x32xf32>
    %234 = arith.divf %232, %233 : vector<2x32xf32>
    %235 = arith.mulf %226, %206 : vector<2x32xf32>
    %236 = arith.mulf %220, %228 : vector<2x32xf32>
    %237 = arith.addf %235, %236 : vector<2x32xf32>
    %238 = math.tanh %237 : vector<2x32xf32>
    %239 = arith.mulf %234, %238 : vector<2x32xf32>
    %240 = arith.maximumf %209, %239 : vector<2x32xf32>
    %c7_i32_55 = arith.constant 7 : i32
    %cst_56 = arith.constant dense<0.000000e+00> : vector<2x64xf32>
    %241 = tpu.matmul %240, %1, %cst_56 {dimension_numbers = #tpu.dot_dimension_numbers<[1], [0], [0], [1], [0, 0, 1, 1], [], []>} : vector<2x32xf32>, vector<32x64xf32>, vector<2x64xf32> -> vector<2x64xf32>
    %242 = vector.broadcast %2 : vector<1x64xf32> to vector<2x64xf32>
    %243 = arith.addf %241, %242 : vector<2x64xf32>
    %cst_57 = arith.constant 0.000000e+00 : f32
    %244 = vector.broadcast %cst_57 : f32 to vector<2x64xf32>
    %245 = arith.maximumf %243, %244 : vector<2x64xf32>
    %cst_58 = arith.constant dense<0.000000e+00> : vector<2x4xf32>
    %246 = tpu.matmul %245, %3, %cst_58 {dimension_numbers = #tpu.dot_dimension_numbers<[1], [0], [0], [1], [0, 0, 1, 1], [], []>} : vector<2x64xf32>, vector<64x4xf32>, vector<2x4xf32> -> vector<2x4xf32>
    %247 = vector.broadcast %4 : vector<1x4xf32> to vector<2x4xf32>
    %248 = arith.addf %246, %247 : vector<2x4xf32>
    %cst_59 = arith.constant dense<0xFF800000> : vector<2xf32>
    %249 = vector.multi_reduction <maximumf>, %248, %cst_59 [1] : vector<2x4xf32> to vector<2xf32>
    %250 = vector.shape_cast %249 : vector<2xf32> to vector<2x1xf32>
    %251 = vector.broadcast %250 : vector<2x1xf32> to vector<2x4xf32>
    %252 = arith.subf %248, %251 : vector<2x4xf32>
    %253 = math.exp %252 : vector<2x4xf32>
    %cst_60 = arith.constant dense<0.000000e+00> : vector<2xf32>
    %254 = vector.multi_reduction <add>, %253, %cst_60 [1] : vector<2x4xf32> to vector<2xf32>
    %255 = vector.shape_cast %254 : vector<2xf32> to vector<2x1xf32>
    %256 = vector.broadcast %255 : vector<2x1xf32> to vector<2x4xf32>
    %257 = arith.divf %253, %256 : vector<2x4xf32>
    %c0_61 = arith.constant 0 : index
    %c0_62 = arith.constant 0 : index
    %258 = vector.load %arg7[%c0_61, %c0_62] : memref<2x4xf32, #tpu.memory_space<vmem>>, vector<2x4xf32>
    tpu.vector_store %arg7[%c0_61, %c0_62], %257 {strides = array<i32>} : memref<2x4xf32, #tpu.memory_space<vmem>>, vector<2x4xf32>,
    return
  }
  func.func @transform_0(%arg0: i32) -> (i32, i32, i32) {
    %c0_i32 = arith.constant 0 : i32
    %c0_i32_0 = arith.constant 0 : i32
    %c0_i32_1 = arith.constant 0 : i32
    return %c0_i32, %arg0, %c0_i32_0 : i32, i32, i32
  }
  func.func @transform_1(%arg0: i32) -> (i32, i32) {
    %c0_i32 = arith.constant 0 : i32
    %c0_i32_0 = arith.constant 0 : i32
    %c0_i32_1 = arith.constant 0 : i32
    return %c0_i32, %c0_i32_0 : i32, i32
  }
  func.func @transform_2(%arg0: i32) -> (i32, i32) {
    %c0_i32 = arith.constant 0 : i32
    %c0_i32_0 = arith.constant 0 : i32
    %c0_i32_1 = arith.constant 0 : i32
    return %c0_i32, %c0_i32_0 : i32, i32
  }
  func.func @transform_3(%arg0: i32) -> (i32, i32) {
    %c0_i32 = arith.constant 0 : i32
    %c0_i32_0 = arith.constant 0 : i32
    %c0_i32_1 = arith.constant 0 : i32
    return %c0_i32, %c0_i32_0 : i32, i32
  }
  func.func @transform_4(%arg0: i32) -> (i32, i32) {
    %c0_i32 = arith.constant 0 : i32
    %c0_i32_0 = arith.constant 0 : i32
    %c0_i32_1 = arith.constant 0 : i32
    return %c0_i32, %c0_i32_0 : i32, i32
  }
  func.func @transform_5(%arg0: i32) -> (i32, i32) {
    %c0_i32 = arith.constant 0 : i32
    %c0_i32_0 = arith.constant 0 : i32
    %c0_i32_1 = arith.constant 0 : i32
    return %c0_i32, %c0_i32_0 : i32, i32
  }
  func.func @transform_6(%arg0: i32) -> (i32, i32) {
    %c0_i32 = arith.constant 0 : i32
    %c0_i32_0 = arith.constant 0 : i32
    return %arg0, %c0_i32 : i32, i32
  }
}

</mosaic_0001>

<llo_original>
// kernel: tpu_custom_call.1
$region0: #{tpu_custom_call.1}
  #allocation0 [shape = 'u32[]', space=smem, size = 0x4, offset = 0x4, fixed_abs, tag = 'smem constant byte address 0x4 - core index']
  #allocation1 [shape = 'u32[144,128]{1,0:T(1,128)}', space=vmem, size = 0x12000, scoped, tag = 'internal scratch']
  %s0 = inlined_call_operand.hbm [shape: f32[8,2,128], index: 0, kind: input, shape index: {}]
  %s1 = inlined_call_operand.vmem [shape: f32[32,128], index: 1, kind: input, shape index: {}]
  %s2 = inlined_call_operand.vmem [shape: f32[32,64], index: 2, kind: input, shape index: {}]
  %s3 = inlined_call_operand.vmem [shape: f32[1,64], index: 3, kind: input, shape index: {}]
  %s4 = inlined_call_operand.vmem [shape: f32[64,4], index: 4, kind: input, shape index: {}]
  %s5 = inlined_call_operand.vmem [shape: f32[1,4], index: 5, kind: input, shape index: {}]
  %s6 = inlined_call_operand.hbm [shape: f32[2,4], index: 6, kind: output, shape index: {}]
  %s7 = sld [smem:[#allocation0]]
  $region38: #{tpu_custom_call.1} parent=0
    _
  %s9 = ssub.s32 1, %s7
  %s10 = scalar_select 0, %s9, %s7
  $region1: #{tpu_custom_call.1} parent=0
    #allocation2 [shape = 'u8[8192]{0}', space=vmem, size = 0x2000, scoped, tag = 'input window, operand 0, single buffered']
    #allocation3 [shape = 's32[1]{0}', space=sflag, size = 0x4, scoped, tag = 'scoped memory for tpu_custom_call.1']
    #allocation4 [shape = 's32[1]{0}', space=sflag, size = 0x4, scoped, tag = 'scoped memory for tpu_custom_call.1']
    #allocation5 [shape = 'u8[1024]{0}', space=vmem, size = 0x400, scoped, tag = 'output window, operand 0, single buffered']
    %11 = vsyncpa [#allocation3], 0
    %12 = vsyncpa [#allocation4], 0
    // Predicated region
    $region2: #{tpu_custom_call.1} parent=1 // pred_check
      _
    $region3: #{tpu_custom_call.1} parent=1 // pred_check_branch
      %14 = sbr.rel (0) target = $region5
    $region4: #{tpu_custom_call.1} parent=1 // pred_region
      %s16 = ssub.s32 256, 256
      %17 = vsyncadd [#allocation3], %s16
      %s18 = sshll.u32 [#allocation2], 4
      %s19 = int_to_ptr.vmem [resolvable:$true] %s18
      %24 = dma.hbm_to_vmem [thread:$0]  %s0, 256, %s19, [#allocation3], 32, 32, 2
    $region5: #{tpu_custom_call.1} parent=1 // pred_fallthru
      _
    // Predicated region
    $region6: #{tpu_custom_call.1} parent=1 // pred_check
      _
    $region7: #{tpu_custom_call.1} parent=1 // pred_check_branch
      %26 = sbr.rel (0) target = $region9
    $region8: #{tpu_custom_call.1} parent=1 // pred_region
      _
    $region9: #{tpu_custom_call.1} parent=1 // pred_fallthru
      _
    // Predicated region
    $region10: #{tpu_custom_call.1} parent=1 // pred_check
      _
    $region11: #{tpu_custom_call.1} parent=1 // pred_check_branch
      %28 = sbr.rel (0) target = $region13
    $region12: #{tpu_custom_call.1} parent=1 // pred_region
      _
    $region13: #{tpu_custom_call.1} parent=1 // pred_fallthru
      _
    // Predicated region
    $region14: #{tpu_custom_call.1} parent=1 // pred_check
      _
    $region15: #{tpu_custom_call.1} parent=1 // pred_check_branch
      %30 = sbr.rel (0) target = $region17
    $region16: #{tpu_custom_call.1} parent=1 // pred_region
      _
    $region17: #{tpu_custom_call.1} parent=1 // pred_fallthru
      _
    // Predicated region
    $region18: #{tpu_custom_call.1} parent=1 // pred_check
      _
    $region19: #{tpu_custom_call.1} parent=1 // pred_check_branch
      %32 = sbr.rel (0) target = $region21
    $region20: #{tpu_custom_call.1} parent=1 // pred_region
      _
    $region21: #{tpu_custom_call.1} parent=1 // pred_fallthru
      _
    // Predicated region
    $region22: #{tpu_custom_call.1} parent=1 // pred_check
      _
    $region23: #{tpu_custom_call.1} parent=1 // pred_check_branch
      %34 = sbr.rel (0) target = $region25
    $region24: #{tpu_custom_call.1} parent=1 // pred_region
      _
    $region25: #{tpu_custom_call.1} parent=1 // pred_fallthru
      _
    // Predicated region
    $region26: #{tpu_custom_call.1} parent=1 // pred_check
      _
    $region27: #{tpu_custom_call.1} parent=1 // pred_check_branch
      %36 = sbr.rel (0) target = $region29
    $region28: #{tpu_custom_call.1} parent=1 // pred_region
      %37 = dma.done [#allocation3], 256
    $region29: #{tpu_custom_call.1} parent=1 // pred_fallthru
      _
    %v38 = vld [vmem:[%s1] sm:$0xff]
    %v39 = vld [vmem:[%s1 + $0x8] sm:$0xff]
    %v40 = vld [vmem:[%s1 + $0x10] sm:$0xff]
    %v41 = vld [vmem:[%s1 + $0x18] sm:$0xff]
    %v42 = vld [vmem:[%s2] sm:$0xff]
    %v43 = vld [vmem:[%s2 + $0x8] sm:$0xff]
    %v44 = vld [vmem:[%s2 + $0x10] sm:$0xff]
    %v45 = vld [vmem:[%s2 + $0x18] sm:$0xff]
    %v46 = vld [vmem:[%s3] sm:$0x1]
    %v47 = vld [vmem:[%s4] sm:$0xff]
    %v48 = vld [vmem:[%s4 + $0x8] sm:$0xff]
    %v49 = vld [vmem:[%s4 + $0x10] sm:$0xff]
    %v50 = vld [vmem:[%s4 + $0x18] sm:$0xff]
    %v51 = vld [vmem:[%s4 + $0x20] sm:$0xff]
    %v52 = vld [vmem:[%s4 + $0x28] sm:$0xff]
    %v53 = vld [vmem:[%s4 + $0x30] sm:$0xff]
    %v54 = vld [vmem:[%s4 + $0x38] sm:$0xff]
    %v55 = vld [vmem:[%s5] sm:$0x1]
    %v56 = vld [vmem:[#allocation2] sm:$0x3]
    %v57 = vxor.u32 %v56, 2147483648
    %v58 = vmul.f32 %v57, 1.442695
    %v59 = vpow.pop %v58
    %v60 = vadd.f32 %v59, 1.0
    %v61 = vrcp.pop %v60
    %v62 = vmul.f32 1.0, %v61
    %v63 = vtanh.pop %v56
    %65 = vrot.lane.b32.xlu0 %v63, 64
    %v66 = vpop.permute.xlu0 %65
    %v68 = vmul.f32 %v62, %v66
    %v69 = vtanh.pop %v68
    %71 = vrot.lane.b32.xlu0 %v69, 96
    %v72 = vpop.permute.xlu0 %71
    %v74 = vmul.f32 %v62, %v72
    %s75 = scalar_lea.vmem [#allocation2], 2
    %v76 = vld [vmem:[%s75] sm:$0x3]
    %78 = vrot.lane.b32.xlu0 %v74, 32
    %v79 = vpop.permute.xlu0 %78
    %vm80 = vcmask 261120
    %v81 = vsel %vm80, %v79, 0
    %83 = vmatprep.subr.mxu0 0.0
    %84 = vmatpush1.msra.mxu0 %v38
    %85 = vmatprep.subr.mxu0 0.0
    %86 = vmatpush1.msra.mxu0 %v39
    %87 = vmatprep.subr.mxu0 0.0
    %88 = vmatpush1.msra.mxu0 %v40
    %89 = vmatprep.subr.mxu0 0.0
    %90 = vmatpush1.msra.mxu0 %v41
    %91 = vmatprep.subr.mxu0 0.0
    %92 = vmatpush1.msra.mxu0 0.0
    %93 = vmatprep.subr.mxu0 0.0
    %94 = vmatpush1.msra.mxu0 0.0
    %95 = vmatprep.subr.mxu0 0.0
    %96 = vmatpush1.msra.mxu0 0.0
    %97 = vmatprep.subr.mxu0 0.0
    %98 = vmatpush1.msra.mxu0 0.0
    %99 = vmatprep.subr.mxu0 0.0
    %100 = vmatpush1.msra.mxu0 0.0
    %101 = vmatprep.subr.mxu0 0.0
    %102 = vmatpush1.msra.mxu0 0.0
    %103 = vmatprep.subr.mxu0 0.0
    %104 = vmatpush1.msra.mxu0 0.0
    %105 = vmatprep.subr.mxu0 0.0
    %106 = vmatpush1.msra.mxu0 0.0
    %107 = vmatprep.subr.mxu0 0.0
    %108 = vmatpush1.msra.mxu0 0.0
    %109 = vmatprep.subr.mxu0 0.0
    %110 = vmatpush1.msra.mxu0 0.0
    %111 = vmatprep.subr.mxu0 0.0
    %112 = vmatpush1.msra.mxu0 0.0
    %113 = vmatprep.subr.mxu0 0.0
    %114 = vmatpush1.msra.mxu0 0.0
    %115 = vmatprep.subr.mxu0 0.0
    %116 = vmatpush1.msra.mxu0 0.0
    %117 = vmatprep.subr.mxu0 0.0
    %118 = vmatpush1.msra.mxu0 0.0
    %119 = vmatprep.subr.mxu0 0.0
    %120 = vmatpush1.msra.mxu0 0.0
    %121 = vmatprep.subr.mxu0 0.0
    %122 = vmatpush1.msra.mxu0 0.0
    %123 = vmatprep.subr.mxu0 0.0
    %124 = vmatpush1.msra.mxu0 0.0
    %125 = vmatprep.subr.mxu0 0.0
    %126 = vmatpush1.msra.mxu0 0.0
    %127 = vmatprep.subr.mxu0 0.0
    %128 = vmatpush1.msra.mxu0 0.0
    %129 = vmatprep.subr.mxu0 0.0
    %130 = vmatpush1.msra.mxu0 0.0
    %131 = vmatprep.subr.mxu0 0.0
    %132 = vmatpush1.msra.mxu0 0.0
    %133 = vmatprep.subr.mxu0 0.0
    %134 = vmatpush1.msra.mxu0 0.0
    %135 = vmatprep.subr.mxu0 0.0
    %136 = vmatpush1.msra.mxu0 0.0
    %137 = vmatprep.subr.mxu0 0.0
    %138 = vmatpush1.msra.mxu0 0.0
    %139 = vmatprep.subr.mxu0 0.0
    %140 = vmatpush1.msra.mxu0 0.0
    %141 = vmatprep.subr.mxu0 0.0
    %142 = vmatpush1.msra.mxu0 0.0
    %143 = vmatprep.subr.mxu0 0.0
    %144 = vmatpush1.msra.mxu0 0.0
    %145 = vmatprep.subr.mxu0 0.0
    %146 = vmatpush1.msra.mxu0 0.0
    %147 = vmatprep.mubr.f32.mxu0 0.0
    %148 = vmatmul.mubr.f32.gmra.mrb[0].mxu0 %v81
    %v149 = vpop.f32.mrb[0].mxu0
    %v150 = vadd.f32 0.0, %v149
    %v151 = vpop.f32.mrb[0].mxu0
    %152 = vdwg.mxu0
    %v153 = vadd.f32 %v76, %v150
    %v154 = vxor.u32 %v153, 2147483648
    %v155 = vmul.f32 %v154, 1.442695
    %v156 = vpow.pop %v155
    %v157 = vadd.f32 %v156, 1.0
    %v158 = vrcp.pop %v157
    %v159 = vmul.f32 1.0, %v158
    %v160 = vtanh.pop %v153
    %162 = vrot.lane.b32.xlu0 %v68, 32
    %v163 = vpop.permute.xlu0 %162
    %v165 = vmul.f32 %v159, %v163
    %167 = vrot.lane.b32.xlu0 %v160, 64
    %v168 = vpop.permute.xlu0 %167
    %v170 = vmul.f32 %v159, %v168
    %172 = vrot.lane.b32.xlu0 %v170, 32
    %v173 = vpop.permute.xlu0 %172
    %v175 = vadd.f32 %v165, %v173
    %v176 = vtanh.pop %v175
    %178 = vrot.lane.b32.xlu0 %v176, 64
    %v179 = vpop.permute.xlu0 %178
    %v181 = vmul.f32 %v159, %v179
    %v182 = vmax.f32 %v74, %v181
    %s183 = scalar_lea.vmem [#allocation2], 4
    %v184 = vld [vmem:[%s183] sm:$0x3]
    %186 = vrot.lane.b32.xlu0 %v181, 32
    %v187 = vpop.permute.xlu0 %186
    %v188 = vsel %vm80, %v187, 0
    %190 = vmatprep.subr.mxu0 0.0
    %191 = vmatpush1.msra.mxu0 %v38
    %192 = vmatprep.subr.mxu0 0.0
    %193 = vmatpush1.msra.mxu0 %v39
    %194 = vmatprep.subr.mxu0 0.0
    %195 = vmatpush1.msra.mxu0 %v40
    %196 = vmatprep.subr.mxu0 0.0
    %197 = vmatpush1.msra.mxu0 %v41
    %198 = vmatprep.subr.mxu0 0.0
    %199 = vmatpush1.msra.mxu0 0.0
    %200 = vmatprep.subr.mxu0 0.0
    %201 = vmatpush1.msra.mxu0 0.0
    %202 = vmatprep.subr.mxu0 0.0
    %203 = vmatpush1.msra.mxu0 0.0
    %204 = vmatprep.subr.mxu0 0.0
    %205 = vmatpush1.msra.mxu0 0.0
    %206 = vmatprep.subr.mxu0 0.0
    %207 = vmatpush1.msra.mxu0 0.0
    %208 = vmatprep.subr.mxu0 0.0
    %209 = vmatpush1.msra.mxu0 0.0
    %210 = vmatprep.subr.mxu0 0.0
    %211 = vmatpush1.msra.mxu0 0.0
    %212 = vmatprep.subr.mxu0 0.0
    %213 = vmatpush1.msra.mxu0 0.0
    %214 = vmatprep.subr.mxu0 0.0
    %215 = vmatpush1.msra.mxu0 0.0
    %216 = vmatprep.subr.mxu0 0.0
    %217 = vmatpush1.msra.mxu0 0.0
    %218 = vmatprep.subr.mxu0 0.0
    %219 = vmatpush1.msra.mxu0 0.0
    %220 = vmatprep.subr.mxu0 0.0
    %221 = vmatpush1.msra.mxu0 0.0
    %222 = vmatprep.subr.mxu0 0.0
    %223 = vmatpush1.msra.mxu0 0.0
    %224 = vmatprep.subr.mxu0 0.0
    %225 = vmatpush1.msra.mxu0 0.0
    %226 = vmatprep.subr.mxu0 0.0
    %227 = vmatpush1.msra.mxu0 0.0
    %228 = vmatprep.subr.mxu0 0.0
    %229 = vmatpush1.msra.mxu0 0.0
    %230 = vmatprep.subr.mxu0 0.0
    %231 = vmatpush1.msra.mxu0 0.0
    %232 = vmatprep.subr.mxu0 0.0
    %233 = vmatpush1.msra.mxu0 0.0
    %234 = vmatprep.subr.mxu0 0.0
    %235 = vmatpush1.msra.mxu0 0.0
    %236 = vmatprep.subr.mxu0 0.0
    %237 = vmatpush1.msra.mxu0 0.0
    %238 = vmatprep.subr.mxu0 0.0
    %239 = vmatpush1.msra.mxu0 0.0
    %240 = vmatprep.subr.mxu0 0.0
    %241 = vmatpush1.msra.mxu0 0.0
    %242 = vmatprep.subr.mxu0 0.0
    %243 = vmatpush1.msra.mxu0 0.0
    %244 = vmatprep.subr.mxu0 0.0
    %245 = vmatpush1.msra.mxu0 0.0
    %246 = vmatprep.subr.mxu0 0.0
    %247 = vmatpush1.msra.mxu0 0.0
    %248 = vmatprep.subr.mxu0 0.0
    %249 = vmatpush1.msra.mxu0 0.0
    %250 = vmatprep.subr.mxu0 0.0
    %251 = vmatpush1.msra.mxu0 0.0
    %252 = vmatprep.subr.mxu0 0.0
    %253 = vmatpush1.msra.mxu0 0.0
    %254 = vmatprep.mubr.f32.mxu0 0.0
    %255 = vmatmul.mubr.f32.gmra.mrb[0].mxu0 %v188
    %v256 = vpop.f32.mrb[0].mxu0
    %v257 = vadd.f32 0.0, %v256
    %v258 = vpop.f32.mrb[0].mxu0
    %259 = vdwg.mxu0
    %v260 = vadd.f32 %v184, %v257
    %v261 = vxor.u32 %v260, 2147483648
    %v262 = vmul.f32 %v261, 1.442695
    %v263 = vpow.pop %v262
    %v264 = vadd.f32 %v263, 1.0
    %v265 = vrcp.pop %v264
    %v266 = vmul.f32 1.0, %v265
    %v267 = vtanh.pop %v260
    %v268 = vmul.f32 %v266, %v175
    %270 = vrot.lane.b32.xlu0 %v267, 64
    %v271 = vpop.permute.xlu0 %270
    %v273 = vmul.f32 %v266, %v271
    %275 = vrot.lane.b32.xlu0 %v273, 32
    %v276 = vpop.permute.xlu0 %275
    %v278 = vadd.f32 %v268, %v276
    %v279 = vtanh.pop %v278
    %281 = vrot.lane.b32.xlu0 %v279, 64
    %v282 = vpop.permute.xlu0 %281
    %v284 = vmul.f32 %v266, %v282
    %v285 = vmax.f32 %v182, %v284
    %s286 = scalar_lea.vmem [#allocation2], 6
    %v287 = vld [vmem:[%s286] sm:$0x3]
    %289 = vrot.lane.b32.xlu0 %v284, 32
    %v290 = vpop.permute.xlu0 %289
    %v291 = vsel %vm80, %v290, 0
    %293 = vmatprep.subr.mxu0 0.0
    %294 = vmatpush1.msra.mxu0 %v38
    %295 = vmatprep.subr.mxu0 0.0
    %296 = vmatpush1.msra.mxu0 %v39
    %297 = vmatprep.subr.mxu0 0.0
    %298 = vmatpush1.msra.mxu0 %v40
    %299 = vmatprep.subr.mxu0 0.0
    %300 = vmatpush1.msra.mxu0 %v41
    %301 = vmatprep.subr.mxu0 0.0
    %302 = vmatpush1.msra.mxu0 0.0
    %303 = vmatprep.subr.mxu0 0.0
    %304 = vmatpush1.msra.mxu0 0.0
    %305 = vmatprep.subr.mxu0 0.0
    %306 = vmatpush1.msra.mxu0 0.0
    %307 = vmatprep.subr.mxu0 0.0
    %308 = vmatpush1.msra.mxu0 0.0
    %309 = vmatprep.subr.mxu0 0.0
    %310 = vmatpush1.msra.mxu0 0.0
    %311 = vmatprep.subr.mxu0 0.0
    %312 = vmatpush1.msra.mxu0 0.0
    %313 = vmatprep.subr.mxu0 0.0
    %314 = vmatpush1.msra.mxu0 0.0
    %315 = vmatprep.subr.mxu0 0.0
    %316 = vmatpush1.msra.mxu0 0.0
    %317 = vmatprep.subr.mxu0 0.0
    %318 = vmatpush1.msra.mxu0 0.0
    %319 = vmatprep.subr.mxu0 0.0
    %320 = vmatpush1.msra.mxu0 0.0
    %321 = vmatprep.subr.mxu0 0.0
    %322 = vmatpush1.msra.mxu0 0.0
    %323 = vmatprep.subr.mxu0 0.0
    %324 = vmatpush1.msra.mxu0 0.0
    %325 = vmatprep.subr.mxu0 0.0
    %326 = vmatpush1.msra.mxu0 0.0
    %327 = vmatprep.subr.mxu0 0.0
    %328 = vmatpush1.msra.mxu0 0.0
    %329 = vmatprep.subr.mxu0 0.0
    %330 = vmatpush1.msra.mxu0 0.0
    %331 = vmatprep.subr.mxu0 0.0
    %332 = vmatpush1.msra.mxu0 0.0
    %333 = vmatprep.subr.mxu0 0.0
    %334 = vmatpush1.msra.mxu0 0.0
    %335 = vmatprep.subr.mxu0 0.0
    %336 = vmatpush1.msra.mxu0 0.0
    %337 = vmatprep.subr.mxu0 0.0
    %338 = vmatpush1.msra.mxu0 0.0
    %339 = vmatprep.subr.mxu0 0.0
    %340 = vmatpush1.msra.mxu0 0.0
    %341 = vmatprep.subr.mxu0 0.0
    %342 = vmatpush1.msra.mxu0 0.0
    %343 = vmatprep.subr.mxu0 0.0
    %344 = vmatpush1.msra.mxu0 0.0
    %345 = vmatprep.subr.mxu0 0.0
    %346 = vmatpush1.msra.mxu0 0.0
    %347 = vmatprep.subr.mxu0 0.0
    %348 = vmatpush1.msra.mxu0 0.0
    %349 = vmatprep.subr.mxu0 0.0
    %350 = vmatpush1.msra.mxu0 0.0
    %351 = vmatprep.subr.mxu0 0.0
    %352 = vmatpush1.msra.mxu0 0.0
    %353 = vmatprep.subr.mxu0 0.0
    %354 = vmatpush1.msra.mxu0 0.0
    %355 = vmatprep.subr.mxu0 0.0
    %356 = vmatpush1.msra.mxu0 0.0
    %357 = vmatprep.mubr.f32.mxu0 0.0
    %358 = vmatmul.mubr.f32.gmra.mrb[0].mxu0 %v291
    %v359 = vpop.f32.mrb[0].mxu0
    %v360 = vadd.f32 0.0, %v359
    %v361 = vpop.f32.mrb[0].mxu0
    %362 = vdwg.mxu0
    %v363 = vadd.f32 %v287, %v360
    %v364 = vxor.u32 %v363, 2147483648
    %v365 = vmul.f32 %v364, 1.442695
    %v366 = vpow.pop %v365
    %v367 = vadd.f32 %v366, 1.0
    %v368 = vrcp.pop %v367
    %v369 = vmul.f32 1.0, %v368
    %v370 = vtanh.pop %v363
    %v371 = vmul.f32 %v369, %v278
    %373 = vrot.lane.b32.xlu0 %v370, 64
    %v374 = vpop.permute.xlu0 %373
    %v376 = vmul.f32 %v369, %v374
    %378 = vrot.lane.b32.xlu0 %v376, 32
    %v379 = vpop.permute.xlu0 %378
    %v381 = vadd.f32 %v371, %v379
    %v382 = vtanh.pop %v381
    %384 = vrot.lane.b32.xlu0 %v382, 64
    %v385 = vpop.permute.xlu0 %384
    %v387 = vmul.f32 %v369, %v385
    %v388 = vmax.f32 %v285, %v387
    %s389 = scalar_lea.vmem [#allocation2], 8
    %v390 = vld [vmem:[%s389] sm:$0x3]
    %392 = vrot.lane.b32.xlu0 %v387, 32
    %v393 = vpop.permute.xlu0 %392
    %v394 = vsel %vm80, %v393, 0
    %396 = vmatprep.subr.mxu0 0.0
    %397 = vmatpush1.msra.mxu0 %v38
    %398 = vmatprep.subr.mxu0 0.0
    %399 = vmatpush1.msra.mxu0 %v39
    %400 = vmatprep.subr.mxu0 0.0
    %401 = vmatpush1.msra.mxu0 %v40
    %402 = vmatprep.subr.mxu0 0.0
    %403 = vmatpush1.msra.mxu0 %v41
    %404 = vmatprep.subr.mxu0 0.0
    %405 = vmatpush1.msra.mxu0 0.0
    %406 = vmatprep.subr.mxu0 0.0
    %407 = vmatpush1.msra.mxu0 0.0
    %408 = vmatprep.subr.mxu0 0.0
    %409 = vmatpush1.msra.mxu0 0.0
    %410 = vmatprep.subr.mxu0 0.0
    %411 = vmatpush1.msra.mxu0 0.0
    %412 = vmatprep.subr.mxu0 0.0
    %413 = vmatpush1.msra.mxu0 0.0
    %414 = vmatprep.subr.mxu0 0.0
    %415 = vmatpush1.msra.mxu0 0.0
    %416 = vmatprep.subr.mxu0 0.0
    %417 = vmatpush1.msra.mxu0 0.0
    %418 = vmatprep.subr.mxu0 0.0
    %419 = vmatpush1.msra.mxu0 0.0
    %420 = vmatprep.subr.mxu0 0.0
    %421 = vmatpush1.msra.mxu0 0.0
    %422 = vmatprep.subr.mxu0 0.0
    %423 = vmatpush1.msra.mxu0 0.0
    %424 = vmatprep.subr.mxu0 0.0
    %425 = vmatpush1.msra.mxu0 0.0
    %426 = vmatprep.subr.mxu0 0.0
    %427 = vmatpush1.msra.mxu0 0.0
    %428 = vmatprep.subr.mxu0 0.0
    %429 = vmatpush1.msra.mxu0 0.0
    %430 = vmatprep.subr.mxu0 0.0
    %431 = vmatpush1.msra.mxu0 0.0
    %432 = vmatprep.subr.mxu0 0.0
    %433 = vmatpush1.msra.mxu0 0.0
    %434 = vmatprep.subr.mxu0 0.0
    %435 = vmatpush1.msra.mxu0 0.0
    %436 = vmatprep.subr.mxu0 0.0
    %437 = vmatpush1.msra.mxu0 0.0
    %438 = vmatprep.subr.mxu0 0.0
    %439 = vmatpush1.msra.mxu0 0.0
    %440 = vmatprep.subr.mxu0 0.0
    %441 = vmatpush1.msra.mxu0 0.0
    %442 = vmatprep.subr.mxu0 0.0
    %443 = vmatpush1.msra.mxu0 0.0
    %444 = vmatprep.subr.mxu0 0.0
    %445 = vmatpush1.msra.mxu0 0.0
    %446 = vmatprep.subr.mxu0 0.0
    %447 = vmatpush1.msra.mxu0 0.0
    %448 = vmatprep.subr.mxu0 0.0
    %449 = vmatpush1.msra.mxu0 0.0
    %450 = vmatprep.subr.mxu0 0.0
    %451 = vmatpush1.msra.mxu0 0.0
    %452 = vmatprep.subr.mxu0 0.0
    %453 = vmatpush1.msra.mxu0 0.0
    %454 = vmatprep.subr.mxu0 0.0
    %455 = vmatpush1.msra.mxu0 0.0
    %456 = vmatprep.subr.mxu0 0.0
    %457 = vmatpush1.msra.mxu0 0.0
    %458 = vmatprep.subr.mxu0 0.0
    %459 = vmatpush1.msra.mxu0 0.0
    %460 = vmatprep.mubr.f32.mxu0 0.0
    %461 = vmatmul.mubr.f32.gmra.mrb[0].mxu0 %v394
    %v462 = vpop.f32.mrb[0].mxu0
    %v463 = vadd.f32 0.0, %v462
    %v464 = vpop.f32.mrb[0].mxu0
    %465 = vdwg.mxu0
    %v466 = vadd.f32 %v390, %v463
    %v467 = vxor.u32 %v466, 2147483648
    %v468 = vmul.f32 %v467, 1.442695
    %v469 = vpow.pop %v468
    %v470 = vadd.f32 %v469, 1.0
    %v471 = vrcp.pop %v470
    %v472 = vmul.f32 1.0, %v471
    %v473 = vtanh.pop %v466
    %v474 = vmul.f32 %v472, %v381
    %476 = vrot.lane.b32.xlu0 %v473, 64
    %v477 = vpop.permute.xlu0 %476
    %v479 = vmul.f32 %v472, %v477
    %481 = vrot.lane.b32.xlu0 %v479, 32
    %v482 = vpop.permute.xlu0 %481
    %v484 = vadd.f32 %v474, %v482
    %v485 = vtanh.pop %v484
    %487 = vrot.lane.b32.xlu0 %v485, 64
    %v488 = vpop.permute.xlu0 %487
    %v490 = vmul.f32 %v472, %v488
    %v491 = vmax.f32 %v388, %v490
    %s492 = scalar_lea.vmem [#allocation2], 10
    %v493 = vld [vmem:[%s492] sm:$0x3]
    %495 = vrot.lane.b32.xlu0 %v490, 32
    %v496 = vpop.permute.xlu0 %495
    %v497 = vsel %vm80, %v496, 0
    %499 = vmatprep.subr.mxu0 0.0
    %500 = vmatpush1.msra.mxu0 %v38
    %501 = vmatprep.subr.mxu0 0.0
    %502 = vmatpush1.msra.mxu0 %v39
    %503 = vmatprep.subr.mxu0 0.0
    %504 = vmatpush1.msra.mxu0 %v40
    %505 = vmatprep.subr.mxu0 0.0
    %506 = vmatpush1.msra.mxu0 %v41
    %507 = vmatprep.subr.mxu0 0.0
    %508 = vmatpush1.msra.mxu0 0.0
    %509 = vmatprep.subr.mxu0 0.0
    %510 = vmatpush1.msra.mxu0 0.0
    %511 = vmatprep.subr.mxu0 0.0
    %512 = vmatpush1.msra.mxu0 0.0
    %513 = vmatprep.subr.mxu0 0.0
    %514 = vmatpush1.msra.mxu0 0.0
    %515 = vmatprep.subr.mxu0 0.0
    %516 = vmatpush1.msra.mxu0 0.0
    %517 = vmatprep.subr.mxu0 0.0
    %518 = vmatpush1.msra.mxu0 0.0
    %519 = vmatprep.subr.mxu0 0.0
    %520 = vmatpush1.msra.mxu0 0.0
    %521 = vmatprep.subr.mxu0 0.0
    %522 = vmatpush1.msra.mxu0 0.0
    %523 = vmatprep.subr.mxu0 0.0
    %524 = vmatpush1.msra.mxu0 0.0
    %525 = vmatprep.subr.mxu0 0.0
    %526 = vmatpush1.msra.mxu0 0.0
    %527 = vmatprep.subr.mxu0 0.0
    %528 = vmatpush1.msra.mxu0 0.0
    %529 = vmatprep.subr.mxu0 0.0
    %530 = vmatpush1.msra.mxu0 0.0
    %531 = vmatprep.subr.mxu0 0.0
    %532 = vmatpush1.msra.mxu0 0.0
    %533 = vmatprep.subr.mxu0 0.0
    %534 = vmatpush1.msra.mxu0 0.0
    %535 = vmatprep.subr.mxu0 0.0
    %536 = vmatpush1.msra.mxu0 0.0
    %537 = vmatprep.subr.mxu0 0.0
    %538 = vmatpush1.msra.mxu0 0.0
    %539 = vmatprep.subr.mxu0 0.0
    %540 = vmatpush1.msra.mxu0 0.0
    %541 = vmatprep.subr.mxu0 0.0
    %542 = vmatpush1.msra.mxu0 0.0
    %543 = vmatprep.subr.mxu0 0.0
    %544 = vmatpush1.msra.mxu0 0.0
    %545 = vmatprep.subr.mxu0 0.0
    %546 = vmatpush1.msra.mxu0 0.0
    %547 = vmatprep.subr.mxu0 0.0
    %548 = vmatpush1.msra.mxu0 0.0
    %549 = vmatprep.subr.mxu0 0.0
    %550 = vmatpush1.msra.mxu0 0.0
    %551 = vmatprep.subr.mxu0 0.0
    %552 = vmatpush1.msra.mxu0 0.0
    %553 = vmatprep.subr.mxu0 0.0
    %554 = vmatpush1.msra.mxu0 0.0
    %555 = vmatprep.subr.mxu0 0.0
    %556 = vmatpush1.msra.mxu0 0.0
    %557 = vmatprep.subr.mxu0 0.0
    %558 = vmatpush1.msra.mxu0 0.0
    %559 = vmatprep.subr.mxu0 0.0
    %560 = vmatpush1.msra.mxu0 0.0
    %561 = vmatprep.subr.mxu0 0.0
    %562 = vmatpush1.msra.mxu0 0.0
    %563 = vmatprep.mubr.f32.mxu0 0.0
    %564 = vmatmul.mubr.f32.gmra.mrb[0].mxu0 %v497
    %v565 = vpop.f32.mrb[0].mxu0
    %v566 = vadd.f32 0.0, %v565
    %v567 = vpop.f32.mrb[0].mxu0
    %568 = vdwg.mxu0
    %v569 = vadd.f32 %v493, %v566
    %v570 = vxor.u32 %v569, 2147483648
    %v571 = vmul.f32 %v570, 1.442695
    %v572 = vpow.pop %v571
    %v573 = vadd.f32 %v572, 1.0
    %v574 = vrcp.pop %v573
    %v575 = vmul.f32 1.0, %v574
    %v576 = vtanh.pop %v569
    %v577 = vmul.f32 %v575, %v484
    %579 = vrot.lane.b32.xlu0 %v576, 64
    %v580 = vpop.permute.xlu0 %579
    %v582 = vmul.f32 %v575, %v580
    %584 = vrot.lane.b32.xlu0 %v582, 32
    %v585 = vpop.permute.xlu0 %584
    %v587 = vadd.f32 %v577, %v585
    %v588 = vtanh.pop %v587
    %590 = vrot.lane.b32.xlu0 %v588, 64
    %v591 = vpop.permute.xlu0 %590
    %v593 = vmul.f32 %v575, %v591
    %v594 = vmax.f32 %v491, %v593
    %s595 = scalar_lea.vmem [#allocation2], 12
    %v596 = vld [vmem:[%s595] sm:$0x3]
    %598 = vrot.lane.b32.xlu0 %v593, 32
    %v599 = vpop.permute.xlu0 %598
    %v600 = vsel %vm80, %v599, 0
    %602 = vmatprep.subr.mxu0 0.0
    %603 = vmatpush1.msra.mxu0 %v38
    %604 = vmatprep.subr.mxu0 0.0
    %605 = vmatpush1.msra.mxu0 %v39
    %606 = vmatprep.subr.mxu0 0.0
    %607 = vmatpush1.msra.mxu0 %v40
    %608 = vmatprep.subr.mxu0 0.0
    %609 = vmatpush1.msra.mxu0 %v41
    %610 = vmatprep.subr.mxu0 0.0
    %611 = vmatpush1.msra.mxu0 0.0
    %612 = vmatprep.subr.mxu0 0.0
    %613 = vmatpush1.msra.mxu0 0.0
    %614 = vmatprep.subr.mxu0 0.0
    %615 = vmatpush1.msra.mxu0 0.0
    %616 = vmatprep.subr.mxu0 0.0
    %617 = vmatpush1.msra.mxu0 0.0
    %618 = vmatprep.subr.mxu0 0.0
    %619 = vmatpush1.msra.mxu0 0.0
    %620 = vmatprep.subr.mxu0 0.0
    %621 = vmatpush1.msra.mxu0 0.0
    %622 = vmatprep.subr.mxu0 0.0
    %623 = vmatpush1.msra.mxu0 0.0
    %624 = vmatprep.subr.mxu0 0.0
    %625 = vmatpush1.msra.mxu0 0.0
    %626 = vmatprep.subr.mxu0 0.0
    %627 = vmatpush1.msra.mxu0 0.0
    %628 = vmatprep.subr.mxu0 0.0
    %629 = vmatpush1.msra.mxu0 0.0
    %630 = vmatprep.subr.mxu0 0.0
    %631 = vmatpush1.msra.mxu0 0.0
    %632 = vmatprep.subr.mxu0 0.0
    %633 = vmatpush1.msra.mxu0 0.0
    %634 = vmatprep.subr.mxu0 0.0
    %635 = vmatpush1.msra.mxu0 0.0
    %636 = vmatprep.subr.mxu0 0.0
    %637 = vmatpush1.msra.mxu0 0.0
    %638 = vmatprep.subr.mxu0 0.0
    %639 = vmatpush1.msra.mxu0 0.0
    %640 = vmatprep.subr.mxu0 0.0
    %641 = vmatpush1.msra.mxu0 0.0
    %642 = vmatprep.subr.mxu0 0.0
    %643 = vmatpush1.msra.mxu0 0.0
    %644 = vmatprep.subr.mxu0 0.0
    %645 = vmatpush1.msra.mxu0 0.0
    %646 = vmatprep.subr.mxu0 0.0
    %647 = vmatpush1.msra.mxu0 0.0
    %648 = vmatprep.subr.mxu0 0.0
    %649 = vmatpush1.msra.mxu0 0.0
    %650 = vmatprep.subr.mxu0 0.0
    %651 = vmatpush1.msra.mxu0 0.0
    %652 = vmatprep.subr.mxu0 0.0
    %653 = vmatpush1.msra.mxu0 0.0
    %654 = vmatprep.subr.mxu0 0.0
    %655 = vmatpush1.msra.mxu0 0.0
    %656 = vmatprep.subr.mxu0 0.0
    %657 = vmatpush1.msra.mxu0 0.0
    %658 = vmatprep.subr.mxu0 0.0
    %659 = vmatpush1.msra.mxu0 0.0
    %660 = vmatprep.subr.mxu0 0.0
    %661 = vmatpush1.msra.mxu0 0.0
    %662 = vmatprep.subr.mxu0 0.0
    %663 = vmatpush1.msra.mxu0 0.0
    %664 = vmatprep.subr.mxu0 0.0
    %665 = vmatpush1.msra.mxu0 0.0
    %666 = vmatprep.mubr.f32.mxu0 0.0
    %667 = vmatmul.mubr.f32.gmra.mrb[0].mxu0 %v600
    %v668 = vpop.f32.mrb[0].mxu0
    %v669 = vadd.f32 0.0, %v668
    %v670 = vpop.f32.mrb[0].mxu0
    %671 = vdwg.mxu0
    %v672 = vadd.f32 %v596, %v669
    %v673 = vxor.u32 %v672, 2147483648
    %v674 = vmul.f32 %v673, 1.442695
    %v675 = vpow.pop %v674
    %v676 = vadd.f32 %v675, 1.0
    %v677 = vrcp.pop %v676
    %v678 = vmul.f32 1.0, %v677
    %v679 = vtanh.pop %v672
    %v680 = vmul.f32 %v678, %v587
    %682 = vrot.lane.b32.xlu0 %v679, 64
    %v683 = vpop.permute.xlu0 %682
    %v685 = vmul.f32 %v678, %v683
    %687 = vrot.lane.b32.xlu0 %v685, 32
    %v688 = vpop.permute.xlu0 %687
    %v690 = vadd.f32 %v680, %v688
    %v691 = vtanh.pop %v690
    %693 = vrot.lane.b32.xlu0 %v691, 64
    %v694 = vpop.permute.xlu0 %693
    %v696 = vmul.f32 %v678, %v694
    %v697 = vmax.f32 %v594, %v696
    %s698 = scalar_lea.vmem [#allocation2], 14
    %v699 = vld [vmem:[%s698] sm:$0x3]
    %701 = vrot.lane.b32.xlu0 %v696, 32
    %v702 = vpop.permute.xlu0 %701
    %v703 = vsel %vm80, %v702, 0
    %705 = vmatprep.subr.mxu0 0.0
    %706 = vmatpush1.msra.mxu0 %v38
    %707 = vmatprep.subr.mxu0 0.0
    %708 = vmatpush1.msra.mxu0 %v39
    %709 = vmatprep.subr.mxu0 0.0
    %710 = vmatpush1.msra.mxu0 %v40
    %711 = vmatprep.subr.mxu0 0.0
    %712 = vmatpush1.msra.mxu0 %v41
    %713 = vmatprep.subr.mxu0 0.0
    %714 = vmatpush1.msra.mxu0 0.0
    %715 = vmatprep.subr.mxu0 0.0
    %716 = vmatpush1.msra.mxu0 0.0
    %717 = vmatprep.subr.mxu0 0.0
    %718 = vmatpush1.msra.mxu0 0.0
    %719 = vmatprep.subr.mxu0 0.0
    %720 = vmatpush1.msra.mxu0 0.0
    %721 = vmatprep.subr.mxu0 0.0
    %722 = vmatpush1.msra.mxu0 0.0
    %723 = vmatprep.subr.mxu0 0.0
    %724 = vmatpush1.msra.mxu0 0.0
    %725 = vmatprep.subr.mxu0 0.0
    %726 = vmatpush1.msra.mxu0 0.0
    %727 = vmatprep.subr.mxu0 0.0
    %728 = vmatpush1.msra.mxu0 0.0
    %729 = vmatprep.subr.mxu0 0.0
    %730 = vmatpush1.msra.mxu0 0.0
    %731 = vmatprep.subr.mxu0 0.0
    %732 = vmatpush1.msra.mxu0 0.0
    %733 = vmatprep.subr.mxu0 0.0
    %734 = vmatpush1.msra.mxu0 0.0
    %735 = vmatprep.subr.mxu0 0.0
    %736 = vmatpush1.msra.mxu0 0.0
    %737 = vmatprep.subr.mxu0 0.0
    %738 = vmatpush1.msra.mxu0 0.0
    %739 = vmatprep.subr.mxu0 0.0
    %740 = vmatpush1.msra.mxu0 0.0
    %741 = vmatprep.subr.mxu0 0.0
    %742 = vmatpush1.msra.mxu0 0.0
    %743 = vmatprep.subr.mxu0 0.0
    %744 = vmatpush1.msra.mxu0 0.0
    %745 = vmatprep.subr.mxu0 0.0
    %746 = vmatpush1.msra.mxu0 0.0
    %747 = vmatprep.subr.mxu0 0.0
    %748 = vmatpush1.msra.mxu0 0.0
    %749 = vmatprep.subr.mxu0 0.0
    %750 = vmatpush1.msra.mxu0 0.0
    %751 = vmatprep.subr.mxu0 0.0
    %752 = vmatpush1.msra.mxu0 0.0
    %753 = vmatprep.subr.mxu0 0.0
    %754 = vmatpush1.msra.mxu0 0.0
    %755 = vmatprep.subr.mxu0 0.0
    %756 = vmatpush1.msra.mxu0 0.0
    %757 = vmatprep.subr.mxu0 0.0
    %758 = vmatpush1.msra.mxu0 0.0
    %759 = vmatprep.subr.mxu0 0.0
    %760 = vmatpush1.msra.mxu0 0.0
    %761 = vmatprep.subr.mxu0 0.0
    %762 = vmatpush1.msra.mxu0 0.0
    %763 = vmatprep.subr.mxu0 0.0
    %764 = vmatpush1.msra.mxu0 0.0
    %765 = vmatprep.subr.mxu0 0.0
    %766 = vmatpush1.msra.mxu0 0.0
    %767 = vmatprep.subr.mxu0 0.0
    %768 = vmatpush1.msra.mxu0 0.0
    %769 = vmatprep.mubr.f32.mxu0 0.0
    %770 = vmatmul.mubr.f32.gmra.mrb[0].mxu0 %v703
    %v771 = vpop.f32.mrb[0].mxu0
    %v772 = vadd.f32 0.0, %v771
    %v773 = vpop.f32.mrb[0].mxu0
    %774 = vdwg.mxu0
    %v775 = vadd.f32 %v699, %v772
    %v776 = vxor.u32 %v775, 2147483648
    %v777 = vmul.f32 %v776, 1.442695
    %v778 = vpow.pop %v777
    %v779 = vadd.f32 %v778, 1.0
    %v780 = vrcp.pop %v779
    %v781 = vmul.f32 1.0, %v780
    %v782 = vtanh.pop %v775
    %v783 = vmul.f32 %v781, %v690
    %785 = vrot.lane.b32.xlu0 %v782, 64
    %v786 = vpop.permute.xlu0 %785
    %v788 = vmul.f32 %v781, %v786
    %790 = vrot.lane.b32.xlu0 %v788, 32
    %v791 = vpop.permute.xlu0 %790
    %v793 = vadd.f32 %v783, %v791
    %v794 = vtanh.pop %v793
    %796 = vrot.lane.b32.xlu0 %v794, 64
    %v797 = vpop.permute.xlu0 %796
    %v799 = vmul.f32 %v781, %v797
    %v800 = vmax.f32 %v697, %v799
    %v802 = vlaneseq
    %v803 = vshrl.u32 %v802, 7
    %v804 = vsub.s32 0, %v803
    %v805 = vrot.slane %v46, %v804
    %808 = vrot.lane.b32.xlu0 %v800, 32
    %v809 = vpop.permute.xlu0 %808
    %v810 = vsel %vm80, %v809, 0
    %812 = vmatprep.subr.mxu0 0.0
    %813 = vmatpush1.msra.mxu0 %v42
    %814 = vmatprep.subr.mxu0 0.0
    %815 = vmatpush1.msra.mxu0 %v43
    %816 = vmatprep.subr.mxu0 0.0
    %817 = vmatpush1.msra.mxu0 %v44
    %818 = vmatprep.subr.mxu0 0.0
    %819 = vmatpush1.msra.mxu0 %v45
    %820 = vmatprep.subr.mxu0 0.0
    %821 = vmatpush1.msra.mxu0 0.0
    %822 = vmatprep.subr.mxu0 0.0
    %823 = vmatpush1.msra.mxu0 0.0
    %824 = vmatprep.subr.mxu0 0.0
    %825 = vmatpush1.msra.mxu0 0.0
    %826 = vmatprep.subr.mxu0 0.0
    %827 = vmatpush1.msra.mxu0 0.0
    %828 = vmatprep.subr.mxu0 0.0
    %829 = vmatpush1.msra.mxu0 0.0
    %830 = vmatprep.subr.mxu0 0.0
    %831 = vmatpush1.msra.mxu0 0.0
    %832 = vmatprep.subr.mxu0 0.0
    %833 = vmatpush1.msra.mxu0 0.0
    %834 = vmatprep.subr.mxu0 0.0
    %835 = vmatpush1.msra.mxu0 0.0
    %836 = vmatprep.subr.mxu0 0.0
    %837 = vmatpush1.msra.mxu0 0.0
    %838 = vmatprep.subr.mxu0 0.0
    %839 = vmatpush1.msra.mxu0 0.0
    %840 = vmatprep.subr.mxu0 0.0
    %841 = vmatpush1.msra.mxu0 0.0
    %842 = vmatprep.subr.mxu0 0.0
    %843 = vmatpush1.msra.mxu0 0.0
    %844 = vmatprep.subr.mxu0 0.0
    %845 = vmatpush1.msra.mxu0 0.0
    %846 = vmatprep.subr.mxu0 0.0
    %847 = vmatpush1.msra.mxu0 0.0
    %848 = vmatprep.subr.mxu0 0.0
    %849 = vmatpush1.msra.mxu0 0.0
    %850 = vmatprep.subr.mxu0 0.0
    %851 = vmatpush1.msra.mxu0 0.0
    %852 = vmatprep.subr.mxu0 0.0
    %853 = vmatpush1.msra.mxu0 0.0
    %854 = vmatprep.subr.mxu0 0.0
    %855 = vmatpush1.msra.mxu0 0.0
    %856 = vmatprep.subr.mxu0 0.0
    %857 = vmatpush1.msra.mxu0 0.0
    %858 = vmatprep.subr.mxu0 0.0
    %859 = vmatpush1.msra.mxu0 0.0
    %860 = vmatprep.subr.mxu0 0.0
    %861 = vmatpush1.msra.mxu0 0.0
    %862 = vmatprep.subr.mxu0 0.0
    %863 = vmatpush1.msra.mxu0 0.0
    %864 = vmatprep.subr.mxu0 0.0
    %865 = vmatpush1.msra.mxu0 0.0
    %866 = vmatprep.subr.mxu0 0.0
    %867 = vmatpush1.msra.mxu0 0.0
    %868 = vmatprep.subr.mxu0 0.0
    %869 = vmatpush1.msra.mxu0 0.0
    %870 = vmatprep.subr.mxu0 0.0
    %871 = vmatpush1.msra.mxu0 0.0
    %872 = vmatprep.subr.mxu0 0.0
    %873 = vmatpush1.msra.mxu0 0.0
    %874 = vmatprep.subr.mxu0 0.0
    %875 = vmatpush1.msra.mxu0 0.0
    %876 = vmatprep.mubr.f32.mxu0 0.0
    %877 = vmatmul.mubr.f32.gmra.mrb[0].mxu0 %v810
    %v878 = vpop.f32.mrb[0].mxu0
    %v879 = vadd.f32 %v805, %v878
    %v880 = vpop.f32.mrb[0].mxu0
    %881 = vdwg.mxu0
    %v882 = vmax.f32 %v879, 0.0
    %v884 = vlaneseq
    %v885 = vshrl.u32 %v884, 7
    %v886 = vsub.s32 0, %v885
    %v887 = vrot.slane %v55, %v886
    %vm889 = vcmask 523264
    %v891 = vsel %vm889, %v882, 0
    %893 = vmatprep.subr.mxu0 0.0
    %894 = vmatpush1.msra.mxu0 %v47
    %895 = vmatprep.subr.mxu0 0.0
    %896 = vmatpush1.msra.mxu0 %v48
    %897 = vmatprep.subr.mxu0 0.0
    %898 = vmatpush1.msra.mxu0 %v49
    %899 = vmatprep.subr.mxu0 0.0
    %900 = vmatpush1.msra.mxu0 %v50
    %901 = vmatprep.subr.mxu0 0.0
    %902 = vmatpush1.msra.mxu0 %v51
    %903 = vmatprep.subr.mxu0 0.0
    %904 = vmatpush1.msra.mxu0 %v52
    %905 = vmatprep.subr.mxu0 0.0
    %906 = vmatpush1.msra.mxu0 %v53
    %907 = vmatprep.subr.mxu0 0.0
    %908 = vmatpush1.msra.mxu0 %v54
    %909 = vmatprep.subr.mxu0 0.0
    %910 = vmatpush1.msra.mxu0 0.0
    %911 = vmatprep.subr.mxu0 0.0
    %912 = vmatpush1.msra.mxu0 0.0
    %913 = vmatprep.subr.mxu0 0.0
    %914 = vmatpush1.msra.mxu0 0.0
    %915 = vmatprep.subr.mxu0 0.0
    %916 = vmatpush1.msra.mxu0 0.0
    %917 = vmatprep.subr.mxu0 0.0
    %918 = vmatpush1.msra.mxu0 0.0
    %919 = vmatprep.subr.mxu0 0.0
    %920 = vmatpush1.msra.mxu0 0.0
    %921 = vmatprep.subr.mxu0 0.0
    %922 = vmatpush1.msra.mxu0 0.0
    %923 = vmatprep.subr.mxu0 0.0
    %924 = vmatpush1.msra.mxu0 0.0
    %925 = vmatprep.subr.mxu0 0.0
    %926 = vmatpush1.msra.mxu0 0.0
    %927 = vmatprep.subr.mxu0 0.0
    %928 = vmatpush1.msra.mxu0 0.0
    %929 = vmatprep.subr.mxu0 0.0
    %930 = vmatpush1.msra.mxu0 0.0
    %931 = vmatprep.subr.mxu0 0.0
    %932 = vmatpush1.msra.mxu0 0.0
    %933 = vmatprep.subr.mxu0 0.0
    %934 = vmatpush1.msra.mxu0 0.0
    %935 = vmatprep.subr.mxu0 0.0
    %936 = vmatpush1.msra.mxu0 0.0
    %937 = vmatprep.subr.mxu0 0.0
    %938 = vmatpush1.msra.mxu0 0.0
    %939 = vmatprep.subr.mxu0 0.0
    %940 = vmatpush1.msra.mxu0 0.0
    %941 = vmatprep.subr.mxu0 0.0
    %942 = vmatpush1.msra.mxu0 0.0
    %943 = vmatprep.subr.mxu0 0.0
    %944 = vmatpush1.msra.mxu0 0.0
    %945 = vmatprep.subr.mxu0 0.0
    %946 = vmatpush1.msra.mxu0 0.0
    %947 = vmatprep.subr.mxu0 0.0
    %948 = vmatpush1.msra.mxu0 0.0
    %949 = vmatprep.subr.mxu0 0.0
    %950 = vmatpush1.msra.mxu0 0.0
    %951 = vmatprep.subr.mxu0 0.0
    %952 = vmatpush1.msra.mxu0 0.0
    %953 = vmatprep.subr.mxu0 0.0
    %954 = vmatpush1.msra.mxu0 0.0
    %955 = vmatprep.subr.mxu0 0.0
    %956 = vmatpush1.msra.mxu0 0.0
    %957 = vmatprep.mubr.f32.mxu0 0.0
    %958 = vmatmul.mubr.f32.gmra.mrb[0].mxu0 %v891
    %v959 = vpop.f32.mrb[0].mxu0
    %v960 = vadd.f32 %v887, %v959
    %v961 = vpop.f32.mrb[0].mxu0
    %962 = vdwg.mxu0
    %vm963 = vcmask 25600
    %v964 = vsel %vm963, %v960, -inf
    %965 = vmax.xlane.f32.xlu0 %v964
    %v966 = vpop.xlane.xlu0 %965
    %v967 = vsub.f32 %v960, %v966
    %v968 = vmul.f32 %v967, 1.442695
    %v969 = vpow.pop %v968
    %v970 = vsel %vm963, %v969, 0.0
    %971 = vadd.xlane.f32.xlu0 %v970
    %v972 = vpop.xlane.xlu0 %971
    %v973 = vrcp.pop %v972
    %v974 = vmul.f32 %v969, %v973
    %975 = vst.msk [vmem:[#allocation5] sm:$0x3] %vm963, %v974
    // Predicated region
    $region30: #{tpu_custom_call.1} parent=1 // pred_check
      _
    $region31: #{tpu_custom_call.1} parent=1 // pred_check_branch
      %977 = sbr.rel (0) target = $region33
    $region32: #{tpu_custom_call.1} parent=1 // pred_region
      %s979 = ssub.s32 32, 32
      %980 = vsyncadd [#allocation4], %s979
      %s982 = sshll.u32 [#allocation5], 4
      %s983 = int_to_ptr.vmem [resolvable:$true] %s982
      %985 = dma.vmem_to_hbm [thread:$0]  %s983, 32, %s6, [#allocation4]
    $region33: #{tpu_custom_call.1} parent=1 // pred_fallthru
      _
    // Predicated region
    $region34: #{tpu_custom_call.1} parent=1 // pred_check
      _
    $region35: #{tpu_custom_call.1} parent=1 // pred_check_branch
      %987 = sbr.rel (0) target = $region37
    $region36: #{tpu_custom_call.1} parent=1 // pred_region
      %988 = dma.done [#allocation4], 32
    $region37: #{tpu_custom_call.1} parent=1 // pred_fallthru
      _
    %989 = vsyncpa [#allocation3], 1
    %990 = vsyncpa [#allocation4], 1

</llo_original>
